<compile_context>
chip_gen: v6e
topology: v6e:2x2x1
jax: 0.10.0
libtpu: 0.0.40
codegen_flags: <defaults>
</compile_context>

<pallas_src>
import functools

import jax
import jax.numpy as jnp
from jax.experimental import pallas as pl
from jax.experimental.pallas import tpu as pltpu

_LANE = 128      # vreg lane width (same on v5e / v6e / v7x)
_SUBLANE = 8     # f32 sublane count


def _round_up(x, m):
    return ((x + m - 1) // m) * m


def _mlp_kernel(n_layers, *refs):
    """refs = (x_ref, w_0..w_{L-1}, b_0..b_{L-1}, out_ref).

    relu(x@W+b) for all but the last layer, then x@W+b followed by a
    numerically-stable softmax over the last dim.  Padded logit lanes are
    already driven to -1e30 via the padded final bias, so they contribute
    exactly 0 to the softmax denominator — no in-kernel masking needed.
    """
    x_ref = refs[0]
    w_refs = refs[1:1 + n_layers]
    b_refs = refs[1 + n_layers:1 + 2 * n_layers]
    out_ref = refs[-1]

    h = x_ref[...]                       # already f32; no redundant cast
    # Hidden layers: Linear (MXU) + bias + ReLU (VPU).
    for i in range(n_layers - 1):
        h = jnp.dot(h, w_refs[i][...], preferred_element_type=jnp.float32)
        h = jnp.maximum(h + b_refs[i][...], 0.0)
    # Final layer: Linear (bias carries the -1e30 padding mask), no activation.
    logits = jnp.dot(h, w_refs[-1][...], preferred_element_type=jnp.float32)
    logits = logits + b_refs[-1][...]

    # Stable softmax; exp goes to the EUP, divide via approx reciprocal (EUP).
    m = jnp.max(logits, axis=-1, keepdims=True)
    e = jnp.exp(logits - m)
    denom = jnp.sum(e, axis=-1, keepdims=True)
    out_ref[...] = (e * pl.reciprocal(denom, approx=True)).astype(out_ref.dtype)


@functools.partial(jax.jit, static_argnames=("batch_tile",))
def neural_network_policy_forward(x, weights, biases, *, batch_tile=256):
    """Pallas forward pass of NeuralNetworkPolicy.

    x:       (B, input_dim) float32 (any B — padded internally)
    weights: list of (in_dim, out_dim) float32
    biases:  list of (1, out_dim) float32
    """
    n_layers = len(weights)
    B, in_dim = x.shape
    out_dim = weights[-1].shape[1]

    # ---- pad every feature dim to the 128-lane width ----------------------
    dims = [in_dim] + [w.shape[1] for w in weights]
    pdims = [_round_up(d, _LANE) for d in dims]

    w_pad, b_pad = [], []
    for i, (w, b) in enumerate(zip(weights, biases)):
        wp = jnp.zeros((pdims[i], pdims[i + 1]), jnp.float32)
        wp = wp.at[:w.shape[0], :w.shape[1]].set(w.astype(jnp.float32))
        is_last = i == n_layers - 1
        # Final-layer padded bias lanes carry the softmax mask (-1e30) so the
        # kernel never sees them as real logits; hidden padded lanes stay 0
        # (their outgoing weight columns are zero so they never propagate).
        fill = -1e30 if is_last else 0.0
        bp = jnp.full((1, pdims[i + 1]), fill, jnp.float32)
        bp = bp.at[:, :b.shape[-1]].set(b.reshape(1, -1).astype(jnp.float32))
        w_pad.append(wp)
        b_pad.append(bp)

    # ---- sublane/MXU-aligned batch tile; zero-pad ragged batches ----------
    tb = min(_round_up(B, _SUBLANE), _round_up(batch_tile, _SUBLANE))
    Bp = _round_up(B, tb)
    xp = jnp.zeros((Bp, pdims[0]), jnp.float32)
    xp = xp.at[:B, :in_dim].set(x.astype(jnp.float32))

    grid = (Bp // tb,)

    # x / out tiled along batch; weights & biases resident (grid-invariant).
    # TODO(synk): for very large layers on v7x (64 MiB VMEM), single-buffer the
    # invariant weights (pipeline_mode=pl.Buffered(1)) or add an N-tiling axis.
    x_spec = pl.BlockSpec((tb, pdims[0]), lambda i: (i, 0))
    w_specs = [pl.BlockSpec(w.shape, lambda i: (0, 0)) for w in w_pad]
    b_specs = [pl.BlockSpec(b.shape, lambda i: (0, 0)) for b in b_pad]
    out_spec = pl.BlockSpec((tb, pdims[-1]), lambda i: (i, 0))

    # Advisory cost estimate so XLA schedules the custom call sensibly.
    flops = 2 * Bp * sum(pdims[i] * pdims[i + 1] for i in range(n_layers))
    transcendentals = Bp * pdims[-1] + Bp          # exp + approx reciprocal
    bytes_accessed = 4 * (xp.size + Bp * pdims[-1]
                          + sum(w.size for w in w_pad)
                          + sum(b.size for b in b_pad))

    # VMEM budget: double-buffered x/out tiles + (2x-buffered) resident params,
    # with 2x headroom, clamped to [32 MiB default, 96 MiB].
    work_set = 4 * (2 * tb * (pdims[0] + pdims[-1])
                    + 2 * sum(w.size for w in w_pad)
                    + 2 * sum(b.size for b in b_pad))
    vmem_limit = min(96 * 1024 * 1024, max(32 * 1024 * 1024, 2 * work_set))

    kernel = functools.partial(_mlp_kernel, n_layers)

    out_padded = pl.pallas_call(
        kernel,
        out_shape=jax.ShapeDtypeStruct((Bp, pdims[-1]), jnp.float32),
        grid_spec=pltpu.PrefetchScalarGridSpec(
            num_scalar_prefetch=0,
            grid=grid,
            in_specs=[x_spec] + w_specs + b_specs,
            out_specs=out_spec,
        ),
        compiler_params=pltpu.CompilerParams(
            dimension_semantics=("parallel",),
            vmem_limit_bytes=vmem_limit,
        ),
        cost_estimate=pl.CostEstimate(
            flops=flops,
            transcendentals=transcendentals,
            bytes_accessed=bytes_accessed,
        ),
    )(xp, *w_pad, *b_pad)

    return out_padded[:B, :out_dim]


def init_params(key, input_dim, output_dim, hidden_dims):
    """Deterministic synthetic params. Weight shape (in, out), bias (1, out)."""
    dims = [input_dim] + list(hidden_dims) + [output_dim]
    weights, biases = [], []
    for i in range(len(dims) - 1):
        key, wk, bk = jax.random.split(key, 3)
        fan_in = dims[i]
        bound = 1.0 / (fan_in ** 0.5)  # matches nn.Linear default init range
        w = jax.random.uniform(wk, (dims[i], dims[i + 1]),
                               minval=-bound, maxval=bound, dtype=jnp.float32)
        b = jax.random.uniform(bk, (1, dims[i + 1]),
                               minval=-bound, maxval=bound, dtype=jnp.float32)
        weights.append(w)
        biases.append(b)
    return weights, biases


def reference_forward(x, weights, biases):
    h = x
    for w, b in zip(weights[:-1], biases[:-1]):
        h = jnp.maximum(h @ w + b, 0.0)
    logits = h @ weights[-1] + biases[-1]
    return jax.nn.softmax(logits, axis=-1)


if __name__ == "__main__":
    key = jax.random.PRNGKey(0)
    input_dim, hidden_dims, output_dim = 32, [64, 32], 16

    key, pk = jax.random.split(key)
    weights, biases = init_params(pk, input_dim, output_dim, hidden_dims)

    # Case 1: tiny batch (single grid step).
    key, xk = jax.random.split(key)
    x_small = jax.random.normal(xk, (8, input_dim), dtype=jnp.float32)
    out_small = jax.block_until_ready(
        neural_network_policy_forward(x_small, weights, biases))
    ref_small = reference_forward(x_small, weights, biases)
    assert out_small.shape == (8, output_dim)
    assert jnp.allclose(out_small, ref_small, atol=1e-3, rtol=5e-3)
    assert jnp.allclose(jnp.sum(out_small, axis=-1), 1.0, atol=5e-3)

    # Case 2: ragged batch with a real 2-step pipelined grid (256-row tiles).
    key, xk = jax.random.split(key)
    x_big = jax.random.normal(xk, (500, input_dim), dtype=jnp.float32)
    out_big = jax.block_until_ready(
        neural_network_policy_forward(x_big, weights, biases, batch_tile=256))
    ref_big = reference_forward(x_big, weights, biases)
    assert out_big.shape == (500, output_dim)
    assert jnp.allclose(out_big, ref_big, atol=1e-3, rtol=5e-3)
    assert jnp.allclose(jnp.sum(out_big, axis=-1), 1.0, atol=5e-3)

    print("KERNEL_OK")
</pallas_src>

<mosaic_0001>
module attributes {stable_mosaic.version = 11 : i64} {
  func.func @_mlp_kernel(%arg0: i32, %arg1: memref<8x128xf32, #tpu.memory_space<vmem>>, %arg2: memref<128x128xf32, #tpu.memory_space<vmem>>, %arg3: memref<128x128xf32, #tpu.memory_space<vmem>>, %arg4: memref<128x128xf32, #tpu.memory_space<vmem>>, %arg5: memref<1x128xf32, #tpu.memory_space<vmem>>, %arg6: memref<1x128xf32, #tpu.memory_space<vmem>>, %arg7: memref<1x128xf32, #tpu.memory_space<vmem>>, %arg8: memref<8x128xf32, #tpu.memory_space<vmem>>) attributes {dimension_semantics = [#tpu.dimension_semantics<parallel>], iteration_bounds = array<i64: 1>, scalar_prefetch = 0 : i64, scratch_operands = 0 : i64, tpu.core_type = #tpu.core_type<tc>, window_params = [{transform_indices = @transform_0, window_bounds = array<i64: 8, 128>}, {pipeline_mode = #tpu.pipeline_mode<synchronous>, transform_indices = @transform_1, window_bounds = array<i64: 128, 128>}, {pipeline_mode = #tpu.pipeline_mode<synchronous>, transform_indices = @transform_2, window_bounds = array<i64: 128, 128>}, {pipeline_mode = #tpu.pipeline_mode<synchronous>, transform_indices = @transform_3, window_bounds = array<i64: 128, 128>}, {pipeline_mode = #tpu.pipeline_mode<synchronous>, transform_indices = @transform_4, window_bounds = array<i64: 1, 128>}, {pipeline_mode = #tpu.pipeline_mode<synchronous>, transform_indices = @transform_5, window_bounds = array<i64: 1, 128>}, {pipeline_mode = #tpu.pipeline_mode<synchronous>, transform_indices = @transform_6, window_bounds = array<i64: 1, 128>}, {transform_indices = @transform_7, window_bounds = array<i64: 8, 128>}]} {
    %c0 = arith.constant 0 : index
    %c0_0 = arith.constant 0 : index
    %0 = vector.load %arg1[%c0, %c0_0] : memref<8x128xf32, #tpu.memory_space<vmem>>, vector<8x128xf32>
    %c0_1 = arith.constant 0 : index
    %c0_2 = arith.constant 0 : index
    %1 = vector.load %arg2[%c0_1, %c0_2] : memref<128x128xf32, #tpu.memory_space<vmem>>, vector<128x128xf32>
    %cst = arith.constant dense<0.000000e+00> : vector<8x128xf32>
    %2 = tpu.matmul %0, %1, %cst {dimension_numbers = #tpu.dot_dimension_numbers<[1], [0], [0], [1], [0, 0, 1, 1], [], []>} : vector<8x128xf32>, vector<128x128xf32>, vector<8x128xf32> -> vector<8x128xf32>
    %c0_3 = arith.constant 0 : index
    %c0_4 = arith.constant 0 : index
    %3 = vector.load %arg5[%c0_3, %c0_4] : memref<1x128xf32, #tpu.memory_space<vmem>>, vector<1x128xf32>
    %4 = vector.broadcast %3 : vector<1x128xf32> to vector<8x128xf32>
    %5 = arith.addf %2, %4 : vector<8x128xf32>
    %cst_5 = arith.constant 0.000000e+00 : f32
    %6 = vector.broadcast %cst_5 : f32 to vector<8x128xf32>
    %7 = arith.maximumf %5, %6 : vector<8x128xf32>
    %c0_6 = arith.constant 0 : index
    %c0_7 = arith.constant 0 : index
    %8 = vector.load %arg3[%c0_6, %c0_7] : memref<128x128xf32, #tpu.memory_space<vmem>>, vector<128x128xf32>
    %cst_8 = arith.constant dense<0.000000e+00> : vector<8x128xf32>
    %9 = tpu.matmul %7, %8, %cst_8 {dimension_numbers = #tpu.dot_dimension_numbers<[1], [0], [0], [1], [0, 0, 1, 1], [], []>} : vector<8x128xf32>, vector<128x128xf32>, vector<8x128xf32> -> vector<8x128xf32>
    %c0_9 = arith.constant 0 : index
    %c0_10 = arith.constant 0 : index
    %10 = vector.load %arg6[%c0_9, %c0_10] : memref<1x128xf32, #tpu.memory_space<vmem>>, vector<1x128xf32>
    %11 = vector.broadcast %10 : vector<1x128xf32> to vector<8x128xf32>
    %12 = arith.addf %9, %11 : vector<8x128xf32>
    %cst_11 = arith.constant 0.000000e+00 : f32
    %13 = vector.broadcast %cst_11 : f32 to vector<8x128xf32>
    %14 = arith.maximumf %12, %13 : vector<8x128xf32>
    %c0_12 = arith.constant 0 : index
    %c0_13 = arith.constant 0 : index
    %15 = vector.load %arg4[%c0_12, %c0_13] : memref<128x128xf32, #tpu.memory_space<vmem>>, vector<128x128xf32>
    %cst_14 = arith.constant dense<0.000000e+00> : vector<8x128xf32>
    %16 = tpu.matmul %14, %15, %cst_14 {dimension_numbers = #tpu.dot_dimension_numbers<[1], [0], [0], [1], [0, 0, 1, 1], [], []>} : vector<8x128xf32>, vector<128x128xf32>, vector<8x128xf32> -> vector<8x128xf32>
    %c0_15 = arith.constant 0 : index
    %c0_16 = arith.constant 0 : index
    %17 = vector.load %arg7[%c0_15, %c0_16] : memref<1x128xf32, #tpu.memory_space<vmem>>, vector<1x128xf32>
    %18 = vector.broadcast %17 : vector<1x128xf32> to vector<8x128xf32>
    %19 = arith.addf %16, %18 : vector<8x128xf32>
    %cst_17 = arith.constant dense<0xFF800000> : vector<8xf32>
    %20 = vector.multi_reduction <maximumf>, %19, %cst_17 [1] : vector<8x128xf32> to vector<8xf32>
    %21 = vector.shape_cast %20 : vector<8xf32> to vector<8x1xf32>
    %22 = vector.broadcast %21 : vector<8x1xf32> to vector<8x128xf32>
    %23 = arith.subf %19, %22 : vector<8x128xf32>
    %24 = math.exp %23 : vector<8x128xf32>
    %cst_18 = arith.constant dense<0.000000e+00> : vector<8xf32>
    %25 = vector.multi_reduction <add>, %24, %cst_18 [1] : vector<8x128xf32> to vector<8xf32>
    %26 = vector.shape_cast %25 : vector<8xf32> to vector<8x1xf32>
    %27 = tpu.reciprocal %26 {approx = true} : vector<8x1xf32> -> vector<8x1xf32>
    %28 = vector.broadcast %27 : vector<8x1xf32> to vector<8x128xf32>
    %29 = arith.mulf %24, %28 : vector<8x128xf32>
    %c0_19 = arith.constant 0 : index
    %c0_20 = arith.constant 0 : index
    %30 = vector.load %arg8[%c0_19, %c0_20] : memref<8x128xf32, #tpu.memory_space<vmem>>, vector<8x128xf32>
    tpu.vector_store %arg8[%c0_19, %c0_20], %29 {strides = array<i32>} : memref<8x128xf32, #tpu.memory_space<vmem>>, vector<8x128xf32>,
    return
  }
  func.func @transform_0(%arg0: i32) -> (i32, i32) {
    %c0_i32 = arith.constant 0 : i32
    %c0_i32_0 = arith.constant 0 : i32
    return %arg0, %c0_i32 : i32, i32
  }
  func.func @transform_1(%arg0: i32) -> (i32, i32) {
    %c0_i32 = arith.constant 0 : i32
    %c0_i32_0 = arith.constant 0 : i32
    %c0_i32_1 = arith.constant 0 : i32
    return %c0_i32, %c0_i32_0 : i32, i32
  }
  func.func @transform_2(%arg0: i32) -> (i32, i32) {
    %c0_i32 = arith.constant 0 : i32
    %c0_i32_0 = arith.constant 0 : i32
    %c0_i32_1 = arith.constant 0 : i32
    return %c0_i32, %c0_i32_0 : i32, i32
  }
  func.func @transform_3(%arg0: i32) -> (i32, i32) {
    %c0_i32 = arith.constant 0 : i32
    %c0_i32_0 = arith.constant 0 : i32
    %c0_i32_1 = arith.constant 0 : i32
    return %c0_i32, %c0_i32_0 : i32, i32
  }
  func.func @transform_4(%arg0: i32) -> (i32, i32) {
    %c0_i32 = arith.constant 0 : i32
    %c0_i32_0 = arith.constant 0 : i32
    %c0_i32_1 = arith.constant 0 : i32
    return %c0_i32, %c0_i32_0 : i32, i32
  }
  func.func @transform_5(%arg0: i32) -> (i32, i32) {
    %c0_i32 = arith.constant 0 : i32
    %c0_i32_0 = arith.constant 0 : i32
    %c0_i32_1 = arith.constant 0 : i32
    return %c0_i32, %c0_i32_0 : i32, i32
  }
  func.func @transform_6(%arg0: i32) -> (i32, i32) {
    %c0_i32 = arith.constant 0 : i32
    %c0_i32_0 = arith.constant 0 : i32
    %c0_i32_1 = arith.constant 0 : i32
    return %c0_i32, %c0_i32_0 : i32, i32
  }
  func.func @transform_7(%arg0: i32) -> (i32, i32) {
    %c0_i32 = arith.constant 0 : i32
    %c0_i32_0 = arith.constant 0 : i32
    return %arg0, %c0_i32 : i32, i32
  }
}

</mosaic_0001>

<llo_original>
// kernel: neural_network_policy_forward.1
$region0: #{neural_network_policy_forward.1}
  #allocation0 [shape = 'u32[]', space=smem, size = 0x4, offset = 0x4, fixed_abs, tag = 'smem constant byte address 0x4 - core index']
  #allocation1 [shape = 'u32[144,128]{1,0:T(1,128)}', space=vmem, size = 0x12000, scoped, tag = 'internal scratch']
  %s0 = inlined_call_operand.vmem [shape: f32[8,128], index: 0, kind: input, shape index: {}]
  %s1 = inlined_call_operand.vmem [shape: f32[128,128], index: 1, kind: input, shape index: {}]
  %s2 = inlined_call_operand.vmem [shape: f32[128,128], index: 2, kind: input, shape index: {}]
  %s3 = inlined_call_operand.vmem [shape: f32[128,128], index: 3, kind: input, shape index: {}]
  %s4 = inlined_call_operand.vmem [shape: f32[1,128], index: 4, kind: input, shape index: {}]
  %s5 = inlined_call_operand.vmem [shape: f32[1,128], index: 5, kind: input, shape index: {}]
  %s6 = inlined_call_operand.vmem [shape: f32[1,128], index: 6, kind: input, shape index: {}]
  %s7 = inlined_call_operand.hbm [shape: f32[8,128], index: 7, kind: output, shape index: {}]
  %s8 = sld [smem:[#allocation0]]
  $region38: #{neural_network_policy_forward.1} parent=0
    _
  %s10 = ssub.s32 1, %s8
  %s11 = scalar_select 0, %s10, %s8
  $region1: #{neural_network_policy_forward.1} parent=0
    #allocation2 [shape = 'u8[4096]{0}', space=vmem, size = 0x1000, scoped, tag = 'output window, operand 0, single buffered']
    #allocation3 [shape = 's32[1]{0}', space=sflag, size = 0x4, scoped, tag = 'scoped memory for neural_network_policy_forward.1']
    %12 = vsyncpa [#allocation3], 0
    // Predicated region
    $region2: #{neural_network_policy_forward.1} parent=1 // pred_check
      _
    $region3: #{neural_network_policy_forward.1} parent=1 // pred_check_branch
      %14 = sbr.rel (0) target = $region5
    $region4: #{neural_network_policy_forward.1} parent=1 // pred_region
      _
    $region5: #{neural_network_policy_forward.1} parent=1 // pred_fallthru
      _
    // Predicated region
    $region6: #{neural_network_policy_forward.1} parent=1 // pred_check
      _
    $region7: #{neural_network_policy_forward.1} parent=1 // pred_check_branch
      %16 = sbr.rel (0) target = $region9
    $region8: #{neural_network_policy_forward.1} parent=1 // pred_region
      _
    $region9: #{neural_network_policy_forward.1} parent=1 // pred_fallthru
      _
    // Predicated region
    $region10: #{neural_network_policy_forward.1} parent=1 // pred_check
      _
    $region11: #{neural_network_policy_forward.1} parent=1 // pred_check_branch
      %18 = sbr.rel (0) target = $region13
    $region12: #{neural_network_policy_forward.1} parent=1 // pred_region
      _
    $region13: #{neural_network_policy_forward.1} parent=1 // pred_fallthru
      _
    // Predicated region
    $region14: #{neural_network_policy_forward.1} parent=1 // pred_check
      _
    $region15: #{neural_network_policy_forward.1} parent=1 // pred_check_branch
      %20 = sbr.rel (0) target = $region17
    $region16: #{neural_network_policy_forward.1} parent=1 // pred_region
      _
    $region17: #{neural_network_policy_forward.1} parent=1 // pred_fallthru
      _
    // Predicated region
    $region18: #{neural_network_policy_forward.1} parent=1 // pred_check
      _
    $region19: #{neural_network_policy_forward.1} parent=1 // pred_check_branch
      %22 = sbr.rel (0) target = $region21
    $region20: #{neural_network_policy_forward.1} parent=1 // pred_region
      _
    $region21: #{neural_network_policy_forward.1} parent=1 // pred_fallthru
      _
    // Predicated region
    $region22: #{neural_network_policy_forward.1} parent=1 // pred_check
      _
    $region23: #{neural_network_policy_forward.1} parent=1 // pred_check_branch
      %24 = sbr.rel (0) target = $region25
    $region24: #{neural_network_policy_forward.1} parent=1 // pred_region
      _
    $region25: #{neural_network_policy_forward.1} parent=1 // pred_fallthru
      _
    // Predicated region
    $region26: #{neural_network_policy_forward.1} parent=1 // pred_check
      _
    $region27: #{neural_network_policy_forward.1} parent=1 // pred_check_branch
      %26 = sbr.rel (0) target = $region29
    $region28: #{neural_network_policy_forward.1} parent=1 // pred_region
      _
    $region29: #{neural_network_policy_forward.1} parent=1 // pred_fallthru
      _
    %v27 = vld [vmem:[%s0] sm:$0xff]
    %v28 = vld [vmem:[%s1] sm:$0xff]
    %v29 = vld [vmem:[%s1 + $0x8] sm:$0xff]
    %v30 = vld [vmem:[%s1 + $0x10] sm:$0xff]
    %v31 = vld [vmem:[%s1 + $0x18] sm:$0xff]
    %v32 = vld [vmem:[%s1 + $0x20] sm:$0xff]
    %v33 = vld [vmem:[%s1 + $0x28] sm:$0xff]
    %v34 = vld [vmem:[%s1 + $0x30] sm:$0xff]
    %v35 = vld [vmem:[%s1 + $0x38] sm:$0xff]
    %v36 = vld [vmem:[%s1 + $0x40] sm:$0xff]
    %v37 = vld [vmem:[%s1 + $0x48] sm:$0xff]
    %v38 = vld [vmem:[%s1 + $0x50] sm:$0xff]
    %v39 = vld [vmem:[%s1 + $0x58] sm:$0xff]
    %v40 = vld [vmem:[%s1 + $0x60] sm:$0xff]
    %v41 = vld [vmem:[%s1 + $0x68] sm:$0xff]
    %v42 = vld [vmem:[%s1 + $0x70] sm:$0xff]
    %v43 = vld [vmem:[%s1 + $0x78] sm:$0xff]
    %v44 = vld [vmem:[%s4] sm:$0x1]
    %v46 = vlaneseq
    %v47 = vshrl.u32 %v46, 7
    %v48 = vsub.s32 0, %v47
    %v49 = vrot.slane %v44, %v48
    %51 = vmatprep.subr.mxu0 0.0
    %52 = vmatpush1.msra.mxu0 %v43
    %53 = vmatprep.subr.mxu0 0.0
    %54 = vmatpush1.msra.mxu0 %v42
    %55 = vmatprep.subr.mxu0 0.0
    %56 = vmatpush1.msra.mxu0 %v41
    %57 = vmatprep.subr.mxu0 0.0
    %58 = vmatpush1.msra.mxu0 %v40
    %59 = vmatprep.subr.mxu0 0.0
    %60 = vmatpush1.msra.mxu0 %v39
    %61 = vmatprep.subr.mxu0 0.0
    %62 = vmatpush1.msra.mxu0 %v38
    %63 = vmatprep.subr.mxu0 0.0
    %64 = vmatpush1.msra.mxu0 %v37
    %65 = vmatprep.subr.mxu0 0.0
    %66 = vmatpush1.msra.mxu0 %v36
    %67 = vmatprep.subr.mxu0 0.0
    %68 = vmatpush1.msra.mxu0 %v35
    %69 = vmatprep.subr.mxu0 0.0
    %70 = vmatpush1.msra.mxu0 %v34
    %71 = vmatprep.subr.mxu0 0.0
    %72 = vmatpush1.msra.mxu0 %v33
    %73 = vmatprep.subr.mxu0 0.0
    %74 = vmatpush1.msra.mxu0 %v32
    %75 = vmatprep.subr.mxu0 0.0
    %76 = vmatpush1.msra.mxu0 %v31
    %77 = vmatprep.subr.mxu0 0.0
    %78 = vmatpush1.msra.mxu0 %v30
    %79 = vmatprep.subr.mxu0 0.0
    %80 = vmatpush1.msra.mxu0 %v29
    %81 = vmatprep.subr.mxu0 0.0
    %82 = vmatpush1.msra.mxu0 %v28
    %83 = vmatprep.subr.mxu0 0.0
    %84 = vmatpush2.msra.mxu0 0.0
    %85 = vmatprep.subr.mxu0 0.0
    %86 = vmatpush2.msra.mxu0 0.0
    %87 = vmatprep.subr.mxu0 0.0
    %88 = vmatpush2.msra.mxu0 0.0
    %89 = vmatprep.subr.mxu0 0.0
    %90 = vmatpush2.msra.mxu0 0.0
    %91 = vmatprep.subr.mxu0 0.0
    %92 = vmatpush2.msra.mxu0 0.0
    %93 = vmatprep.subr.mxu0 0.0
    %94 = vmatpush2.msra.mxu0 0.0
    %95 = vmatprep.subr.mxu0 0.0
    %96 = vmatpush2.msra.mxu0 0.0
    %97 = vmatprep.subr.mxu0 0.0
    %98 = vmatpush2.msra.mxu0 0.0
    %99 = vmatprep.subr.mxu0 0.0
    %100 = vmatpush2.msra.mxu0 0.0
    %101 = vmatprep.subr.mxu0 0.0
    %102 = vmatpush2.msra.mxu0 0.0
    %103 = vmatprep.subr.mxu0 0.0
    %104 = vmatpush2.msra.mxu0 0.0
    %105 = vmatprep.subr.mxu0 0.0
    %106 = vmatpush2.msra.mxu0 0.0
    %107 = vmatprep.subr.mxu0 0.0
    %108 = vmatpush2.msra.mxu0 0.0
    %109 = vmatprep.subr.mxu0 0.0
    %110 = vmatpush2.msra.mxu0 0.0
    %111 = vmatprep.subr.mxu0 0.0
    %112 = vmatpush2.msra.mxu0 0.0
    %113 = vmatprep.subr.mxu0 0.0
    %114 = vmatpush2.msra.mxu0 0.0
    %115 = vmatprep.mubr.f32.mxu0 0.0
    %116 = vmatmul.mubr.f32.gmra.mxu0 %v27
    %v117 = vpop.f32.mrf.mxu0
    %v118 = vadd.f32 %v49, %v117
    %v119 = vpop.f32.mrf.mxu0
    %120 = vdwg.mxu0
    %v121 = vmax.f32 %v118, 0.0
    %v122 = vld [vmem:[%s2] sm:$0xff]
    %v123 = vld [vmem:[%s2 + $0x8] sm:$0xff]
    %v124 = vld [vmem:[%s2 + $0x10] sm:$0xff]
    %v125 = vld [vmem:[%s2 + $0x18] sm:$0xff]
    %v126 = vld [vmem:[%s2 + $0x20] sm:$0xff]
    %v127 = vld [vmem:[%s2 + $0x28] sm:$0xff]
    %v128 = vld [vmem:[%s2 + $0x30] sm:$0xff]
    %v129 = vld [vmem:[%s2 + $0x38] sm:$0xff]
    %v130 = vld [vmem:[%s2 + $0x40] sm:$0xff]
    %v131 = vld [vmem:[%s2 + $0x48] sm:$0xff]
    %v132 = vld [vmem:[%s2 + $0x50] sm:$0xff]
    %v133 = vld [vmem:[%s2 + $0x58] sm:$0xff]
    %v134 = vld [vmem:[%s2 + $0x60] sm:$0xff]
    %v135 = vld [vmem:[%s2 + $0x68] sm:$0xff]
    %v136 = vld [vmem:[%s2 + $0x70] sm:$0xff]
    %v137 = vld [vmem:[%s2 + $0x78] sm:$0xff]
    %v138 = vld [vmem:[%s5] sm:$0x1]
    %v140 = vlaneseq
    %v141 = vshrl.u32 %v140, 7
    %v142 = vsub.s32 0, %v141
    %v143 = vrot.slane %v138, %v142
    %145 = vmatprep.subr.mxu0 0.0
    %146 = vmatpush1.msra.mxu0 %v137
    %147 = vmatprep.subr.mxu0 0.0
    %148 = vmatpush1.msra.mxu0 %v136
    %149 = vmatprep.subr.mxu0 0.0
    %150 = vmatpush1.msra.mxu0 %v135
    %151 = vmatprep.subr.mxu0 0.0
    %152 = vmatpush1.msra.mxu0 %v134
    %153 = vmatprep.subr.mxu0 0.0
    %154 = vmatpush1.msra.mxu0 %v133
    %155 = vmatprep.subr.mxu0 0.0
    %156 = vmatpush1.msra.mxu0 %v132
    %157 = vmatprep.subr.mxu0 0.0
    %158 = vmatpush1.msra.mxu0 %v131
    %159 = vmatprep.subr.mxu0 0.0
    %160 = vmatpush1.msra.mxu0 %v130
    %161 = vmatprep.subr.mxu0 0.0
    %162 = vmatpush1.msra.mxu0 %v129
    %163 = vmatprep.subr.mxu0 0.0
    %164 = vmatpush1.msra.mxu0 %v128
    %165 = vmatprep.subr.mxu0 0.0
    %166 = vmatpush1.msra.mxu0 %v127
    %167 = vmatprep.subr.mxu0 0.0
    %168 = vmatpush1.msra.mxu0 %v126
    %169 = vmatprep.subr.mxu0 0.0
    %170 = vmatpush1.msra.mxu0 %v125
    %171 = vmatprep.subr.mxu0 0.0
    %172 = vmatpush1.msra.mxu0 %v124
    %173 = vmatprep.subr.mxu0 0.0
    %174 = vmatpush1.msra.mxu0 %v123
    %175 = vmatprep.subr.mxu0 0.0
    %176 = vmatpush1.msra.mxu0 %v122
    %177 = vmatprep.subr.mxu0 0.0
    %178 = vmatpush2.msra.mxu0 0.0
    %179 = vmatprep.subr.mxu0 0.0
    %180 = vmatpush2.msra.mxu0 0.0
    %181 = vmatprep.subr.mxu0 0.0
    %182 = vmatpush2.msra.mxu0 0.0
    %183 = vmatprep.subr.mxu0 0.0
    %184 = vmatpush2.msra.mxu0 0.0
    %185 = vmatprep.subr.mxu0 0.0
    %186 = vmatpush2.msra.mxu0 0.0
    %187 = vmatprep.subr.mxu0 0.0
    %188 = vmatpush2.msra.mxu0 0.0
    %189 = vmatprep.subr.mxu0 0.0
    %190 = vmatpush2.msra.mxu0 0.0
    %191 = vmatprep.subr.mxu0 0.0
    %192 = vmatpush2.msra.mxu0 0.0
    %193 = vmatprep.subr.mxu0 0.0
    %194 = vmatpush2.msra.mxu0 0.0
    %195 = vmatprep.subr.mxu0 0.0
    %196 = vmatpush2.msra.mxu0 0.0
    %197 = vmatprep.subr.mxu0 0.0
    %198 = vmatpush2.msra.mxu0 0.0
    %199 = vmatprep.subr.mxu0 0.0
    %200 = vmatpush2.msra.mxu0 0.0
    %201 = vmatprep.subr.mxu0 0.0
    %202 = vmatpush2.msra.mxu0 0.0
    %203 = vmatprep.subr.mxu0 0.0
    %204 = vmatpush2.msra.mxu0 0.0
    %205 = vmatprep.subr.mxu0 0.0
    %206 = vmatpush2.msra.mxu0 0.0
    %207 = vmatprep.subr.mxu0 0.0
    %208 = vmatpush2.msra.mxu0 0.0
    %209 = vmatprep.mubr.f32.mxu0 0.0
    %210 = vmatmul.mubr.f32.gmra.mxu0 %v121
    %v211 = vpop.f32.mrf.mxu0
    %v212 = vadd.f32 %v143, %v211
    %v213 = vpop.f32.mrf.mxu0
    %214 = vdwg.mxu0
    %v215 = vmax.f32 %v212, 0.0
    %v216 = vld [vmem:[%s3] sm:$0xff]
    %v217 = vld [vmem:[%s3 + $0x8] sm:$0xff]
    %v218 = vld [vmem:[%s3 + $0x10] sm:$0xff]
    %v219 = vld [vmem:[%s3 + $0x18] sm:$0xff]
    %v220 = vld [vmem:[%s3 + $0x20] sm:$0xff]
    %v221 = vld [vmem:[%s3 + $0x28] sm:$0xff]
    %v222 = vld [vmem:[%s3 + $0x30] sm:$0xff]
    %v223 = vld [vmem:[%s3 + $0x38] sm:$0xff]
    %v224 = vld [vmem:[%s3 + $0x40] sm:$0xff]
    %v225 = vld [vmem:[%s3 + $0x48] sm:$0xff]
    %v226 = vld [vmem:[%s3 + $0x50] sm:$0xff]
    %v227 = vld [vmem:[%s3 + $0x58] sm:$0xff]
    %v228 = vld [vmem:[%s3 + $0x60] sm:$0xff]
    %v229 = vld [vmem:[%s3 + $0x68] sm:$0xff]
    %v230 = vld [vmem:[%s3 + $0x70] sm:$0xff]
    %v231 = vld [vmem:[%s3 + $0x78] sm:$0xff]
    %v232 = vld [vmem:[%s6] sm:$0x1]
    %v234 = vlaneseq
    %v235 = vshrl.u32 %v234, 7
    %v236 = vsub.s32 0, %v235
    %v237 = vrot.slane %v232, %v236
    %239 = vmatprep.subr.mxu0 0.0
    %240 = vmatpush1.msra.mxu0 %v231
    %241 = vmatprep.subr.mxu0 0.0
    %242 = vmatpush1.msra.mxu0 %v230
    %243 = vmatprep.subr.mxu0 0.0
    %244 = vmatpush1.msra.mxu0 %v229
    %245 = vmatprep.subr.mxu0 0.0
    %246 = vmatpush1.msra.mxu0 %v228
    %247 = vmatprep.subr.mxu0 0.0
    %248 = vmatpush1.msra.mxu0 %v227
    %249 = vmatprep.subr.mxu0 0.0
    %250 = vmatpush1.msra.mxu0 %v226
    %251 = vmatprep.subr.mxu0 0.0
    %252 = vmatpush1.msra.mxu0 %v225
    %253 = vmatprep.subr.mxu0 0.0
    %254 = vmatpush1.msra.mxu0 %v224
    %255 = vmatprep.subr.mxu0 0.0
    %256 = vmatpush1.msra.mxu0 %v223
    %257 = vmatprep.subr.mxu0 0.0
    %258 = vmatpush1.msra.mxu0 %v222
    %259 = vmatprep.subr.mxu0 0.0
    %260 = vmatpush1.msra.mxu0 %v221
    %261 = vmatprep.subr.mxu0 0.0
    %262 = vmatpush1.msra.mxu0 %v220
    %263 = vmatprep.subr.mxu0 0.0
    %264 = vmatpush1.msra.mxu0 %v219
    %265 = vmatprep.subr.mxu0 0.0
    %266 = vmatpush1.msra.mxu0 %v218
    %267 = vmatprep.subr.mxu0 0.0
    %268 = vmatpush1.msra.mxu0 %v217
    %269 = vmatprep.subr.mxu0 0.0
    %270 = vmatpush1.msra.mxu0 %v216
    %271 = vmatprep.subr.mxu0 0.0
    %272 = vmatpush2.msra.mxu0 0.0
    %273 = vmatprep.subr.mxu0 0.0
    %274 = vmatpush2.msra.mxu0 0.0
    %275 = vmatprep.subr.mxu0 0.0
    %276 = vmatpush2.msra.mxu0 0.0
    %277 = vmatprep.subr.mxu0 0.0
    %278 = vmatpush2.msra.mxu0 0.0
    %279 = vmatprep.subr.mxu0 0.0
    %280 = vmatpush2.msra.mxu0 0.0
    %281 = vmatprep.subr.mxu0 0.0
    %282 = vmatpush2.msra.mxu0 0.0
    %283 = vmatprep.subr.mxu0 0.0
    %284 = vmatpush2.msra.mxu0 0.0
    %285 = vmatprep.subr.mxu0 0.0
    %286 = vmatpush2.msra.mxu0 0.0
    %287 = vmatprep.subr.mxu0 0.0
    %288 = vmatpush2.msra.mxu0 0.0
    %289 = vmatprep.subr.mxu0 0.0
    %290 = vmatpush2.msra.mxu0 0.0
    %291 = vmatprep.subr.mxu0 0.0
    %292 = vmatpush2.msra.mxu0 0.0
    %293 = vmatprep.subr.mxu0 0.0
    %294 = vmatpush2.msra.mxu0 0.0
    %295 = vmatprep.subr.mxu0 0.0
    %296 = vmatpush2.msra.mxu0 0.0
    %297 = vmatprep.subr.mxu0 0.0
    %298 = vmatpush2.msra.mxu0 0.0
    %299 = vmatprep.subr.mxu0 0.0
    %300 = vmatpush2.msra.mxu0 0.0
    %301 = vmatprep.subr.mxu0 0.0
    %302 = vmatpush2.msra.mxu0 0.0
    %303 = vmatprep.mubr.f32.mxu0 0.0
    %304 = vmatmul.mubr.f32.gmra.mxu0 %v215
    %v305 = vpop.f32.mrf.mxu0
    %v306 = vadd.f32 %v237, %v305
    %v307 = vpop.f32.mrf.mxu0
    %308 = vdwg.mxu0
    %309 = vmax.xlane.f32.xlu0 %v306
    %v310 = vpop.xlane.xlu0 %309
    %v311 = vsub.f32 %v306, %v310
    %v312 = vmul.f32 %v311, 1.442695
    %v313 = vpow.pop %v312
    %314 = vadd.xlane.f32.xlu0 %v313
    %v315 = vpop.xlane.xlu0 %314
    %v316 = vrcp.pop %v315
    %v317 = vmul.f32 %v313, %v316
    %318 = vst [vmem:[#allocation2] sm:$0xff] %v317
    // Predicated region
    $region30: #{neural_network_policy_forward.1} parent=1 // pred_check
      _
    $region31: #{neural_network_policy_forward.1} parent=1 // pred_check_branch
      %320 = sbr.rel (0) target = $region33
    $region32: #{neural_network_policy_forward.1} parent=1 // pred_region
      %s322 = ssub.s32 128, 128
      %323 = vsyncadd [#allocation3], %s322
      %s325 = sshll.u32 [#allocation2], 4
      %s326 = int_to_ptr.vmem [resolvable:$true] %s325
      %328 = dma.vmem_to_hbm [thread:$0]  %s326, 128, %s7, [#allocation3]
    $region33: #{neural_network_policy_forward.1} parent=1 // pred_fallthru
      _
    // Predicated region
    $region34: #{neural_network_policy_forward.1} parent=1 // pred_check
      _
    $region35: #{neural_network_policy_forward.1} parent=1 // pred_check_branch
      %330 = sbr.rel (0) target = $region37
    $region36: #{neural_network_policy_forward.1} parent=1 // pred_region
      %331 = dma.done [#allocation3], 128
    $region37: #{neural_network_policy_forward.1} parent=1 // pred_fallthru
      _
    %332 = vsyncpa [#allocation3], 1

</llo_original>
